<compile_context>
chip_gen: v6e
topology: v6e:2x2x1
jax: 0.10.0
libtpu: 0.0.40
codegen_flags: <defaults>
</compile_context>

<pallas_src>
import functools
import math

import jax
import jax.numpy as jnp
from jax.experimental import pallas as pl
from jax.experimental.pallas import tpu as pltpu

IGNORE_INDEX = 255
SMOOTH_FACTOR = 0.05   # SoftCrossEntropyLoss(smooth_factor=0.05)
DICE_SMOOTH = 0.05     # DiceLoss(smooth=0.05)
DICE_EPS = 1e-7
EDGE_FACTOR = 1.0

# BCE-with-logits constants: boundary_pre/(boundary_pre+0.01) is in {0, 1/1.01}
_EDGE_A = 1.0 / 1.01
_EDGE_SP = math.log1p(math.exp(-_EDGE_A))   # softplus(-a)
_LOG2 = math.log(2.0)


# --------------------------------------------------------------------------- #
# Kernel 1: SoftCE + Dice partial sums + argmax map, row-tiled.
# --------------------------------------------------------------------------- #
def _main_stats_kernel(logits_ref, targets_ref, stats_ref, pred_ref):
    logits = logits_ref[0].astype(jnp.float32)      # (C, TH, W)
    targets = targets_ref[0]                        # (TH, W) int32
    C, TH, W = logits.shape

    # ---- fused max + argmax over classes (one compare + two selects / class)
    best = logits[0]
    pred = jnp.zeros((TH, W), jnp.float32)
    for c in range(1, C):
        cur = logits[c]
        better = cur > best
        best = jnp.where(better, cur, best)
        pred = jnp.where(better, jnp.float32(c), pred)
    pred_ref[0] = pred.astype(pred_ref.dtype)

    # ---- softmax pieces: one exp + one reciprocal per pixel -----------------
    z = logits - best[None]                         # (C, TH, W), max subtracted
    e = jnp.exp(z)
    s = jnp.sum(e, axis=0, keepdims=True)           # (1, TH, W)
    log_s = jnp.log(s)[0]                           # (TH, W)
    inv_s = pl.reciprocal(s)                        # exact reciprocal (EUP)
    probs = e * inv_s                               # (C, TH, W)

    ignore = targets == IGNORE_INDEX
    valid = jnp.logical_not(ignore).astype(jnp.float32)     # (TH, W)
    tgt_safe = jnp.where(ignore, 0, targets)
    cls_iota = jax.lax.broadcasted_iota(jnp.int32, (C, TH, W), 0)
    tgt_match = cls_iota == tgt_safe[None]          # (C, TH, W) bool

    # ---- SoftCrossEntropy partial sums (z_t via compare-select) -------------
    z_t = jnp.sum(jnp.where(tgt_match, z, 0.0), axis=0)     # z at target class
    nll = log_s - z_t                                        # -logp[target]
    smooth = jnp.float32(C) * log_s - jnp.sum(z, axis=0)     # -sum_c logp
    nll_sum = jnp.sum(nll * valid)
    smooth_sum = jnp.sum(smooth * valid)

    # ---- Dice per-class partial sums -----------------------------------------
    pv = probs * valid[None]                        # masked probs, reused twice

    def col_sum(x3):                                # (C, TH, W) -> (C, 1)
        return jnp.sum(jnp.sum(x3, axis=2), axis=1, keepdims=True)

    inter_col = col_sum(jnp.where(tgt_match, pv, 0.0))
    pv_col = col_sum(pv)
    t_col = col_sum(jnp.where(tgt_match, valid[None], 0.0))
    card_col = pv_col + t_col

    # lane-scatter mask built ONCE and reused for all three per-class rows
    lane_c = jax.lax.broadcasted_iota(jnp.int32, (C, 128), 1)
    row_c = jax.lax.broadcasted_iota(jnp.int32, (C, 128), 0)
    sel = (lane_c == row_c).astype(jnp.float32)
    inter_row = jnp.sum(inter_col * sel, axis=0, keepdims=True)   # (1, 128)
    card_row = jnp.sum(card_col * sel, axis=0, keepdims=True)
    t_row = jnp.sum(t_col * sel, axis=0, keepdims=True)

    # ---- assemble the (8, 128) stats tile ------------------------------------
    sub8 = jax.lax.broadcasted_iota(jnp.int32, (8, 128), 0)
    lane8 = jax.lax.broadcasted_iota(jnp.int32, (8, 128), 1)
    stats = jnp.where((sub8 == 0) & (lane8 == 0), nll_sum, 0.0)
    stats = stats + jnp.where((sub8 == 0) & (lane8 == 1), smooth_sum, 0.0)
    stats = stats + jnp.where(sub8 == 1, inter_row, 0.0)
    stats = stats + jnp.where(sub8 == 2, card_row, 0.0)
    stats = stats + jnp.where(sub8 == 3, t_row, 0.0)
    stats_ref[0, 0] = stats.astype(jnp.float32)


# --------------------------------------------------------------------------- #
# Kernel 2: Laplacian boundary (roll stencil, row-tiled with halo) + BCE.
# --------------------------------------------------------------------------- #
def _edge_bce_kernel(tgt_ref, tgt_top_ref, tgt_bot_ref,
                     pred_ref, pred_top_ref, pred_bot_ref, out_ref, *, w_true):
    r = pl.program_id(1)
    last = pl.num_programs(1) - 1
    t = tgt_ref[0].astype(jnp.float32)               # (TH2, Wp)
    p = pred_ref[0].astype(jnp.float32)              # (TH2, Wp)
    TH2, Wp = t.shape

    use_top = r > 0
    use_bot = r < last

    # hoisted shift keep-masks, shared by boundary(targets) and boundary(pred)
    row_i = jax.lax.broadcasted_iota(jnp.int32, (TH2, Wp), 0)
    col_i = jax.lax.broadcasted_iota(jnp.int32, (TH2, Wp), 1)
    keep_dn = row_i >= 1            # valid region for row shift +1
    keep_up = row_i < TH2 - 1       # valid region for row shift -1
    keep_rt = col_i >= 1            # valid region for col shift +1
    keep_lt = col_i < Wp - 1        # valid region for col shift -1

    def hsum3(x, k_rt, k_lt):
        w = x.shape[-1]
        return (x
                + jnp.where(k_rt, pltpu.roll(x, shift=1, axis=1), 0.0)
                + jnp.where(k_lt, pltpu.roll(x, shift=w - 1, axis=1), 0.0))

    # halo rows: horizontal 3-tap of the single row adjacent to this tile
    halo_rows = tgt_top_ref.shape[1]
    col_h = jax.lax.broadcasted_iota(jnp.int32, (halo_rows, Wp), 1)
    keep_rt_h = col_h >= 1
    keep_lt_h = col_h < Wp - 1
    row_h = jax.lax.broadcasted_iota(jnp.int32, (halo_rows, Wp), 0)

    def halo_rs_row(ref, idx):
        x = ref[0].astype(jnp.float32)               # (halo_rows, Wp)
        rsx = hsum3(x, keep_rt_h, keep_lt_h)
        return jnp.sum(jnp.where(row_h == idx, rsx, 0.0), axis=0, keepdims=True)

    rs_top_t = halo_rs_row(tgt_top_ref, halo_rows - 1)    # row just above tile
    rs_bot_t = halo_rs_row(tgt_bot_ref, 0)                # row just below tile
    rs_top_p = halo_rs_row(pred_top_ref, halo_rows - 1)
    rs_bot_p = halo_rs_row(pred_bot_ref, 0)

    def boundary(x, rs_top, rs_bot):
        # 3x3 Laplacian with zero padding: conv = 9*x - window_sum_3x3(x)
        rs = hsum3(x, keep_rt, keep_lt)                               # (TH2, Wp)
        win = (rs
               + jnp.where(keep_dn, pltpu.roll(rs, shift=1, axis=0), 0.0)
               + jnp.where(keep_up, pltpu.roll(rs, shift=TH2 - 1, axis=0), 0.0))
        win = win + jnp.where(row_i == 0,
                              jnp.where(use_top, rs_top, 0.0), 0.0)
        win = win + jnp.where(row_i == TH2 - 1,
                              jnp.where(use_bot, rs_bot, 0.0), 0.0)
        conv = jnp.maximum(9.0 * x - win, 0.0)
        return jnp.where(conv >= 0.1, 1.0, 0.0)

    # NB: boundary of targets intentionally includes ignore_index pixels,
    # matching the PyTorch reference.
    bt = boundary(t, rs_top_t, rs_bot_t)
    bp = boundary(p, rs_top_p, rs_bot_p)

    # BCE-with-logits with binary inputs: logits in {0, 1/1.01}, targets {0,1}
    bce = jnp.where(bp > 0.5, _EDGE_SP + _EDGE_A * (1.0 - bt), _LOG2)
    if w_true != Wp:                                  # narrow-W fallback only
        bce = bce * (col_i < w_true).astype(jnp.float32)
    bce_sum = jnp.sum(bce)

    sub8 = jax.lax.broadcasted_iota(jnp.int32, (8, 128), 0)
    lane8 = jax.lax.broadcasted_iota(jnp.int32, (8, 128), 1)
    out_ref[0, 0] = jnp.where((sub8 == 0) & (lane8 == 0), bce_sum, 0.0)


# --------------------------------------------------------------------------- #
# Tiling helpers + wrapper
# --------------------------------------------------------------------------- #
def _choose_tile(h, row_bytes, budget, steps=(16, 8)):
    """Largest divisor of h that is a multiple of a preferred step and whose
    per-block footprint fits the budget (falls back to the smallest divisor,
    then to the full extent)."""
    for step in steps:
        best = None
        smallest = None
        t = step
        while t <= h:
            if h % t == 0:
                if smallest is None:
                    smallest = t
                if t * row_bytes <= budget:
                    best = t
            t += step
        if best is not None:
            return best
        if smallest is not None:
            return smallest
    return h


def edge_loss(logits, targets, edge_factor=EDGE_FACTOR, tile_h=None, tile_h2=None):
    B, C, H, W = logits.shape
    assert C <= 128, "per-class lanes assume C <= 128"
    targets = targets.astype(jnp.int32)
    itemsize = jnp.dtype(logits.dtype).itemsize

    try:
        vmem_cap = pltpu.get_tpu_info().vmem_capacity_bytes
    except Exception:                                   # pragma: no cover
        vmem_cap = 64 * 1024 * 1024
    vmem_limit = int(min(vmem_cap * 3 // 4, 100 * 1024 * 1024))
    budget = max(2 << 20, vmem_cap // 8)

    # ---- kernel-1 tiling: budget the f32 intermediate footprint --------------
    k1_row_bytes = C * W * (4 * 10 + 2 * itemsize) + W * 16
    if tile_h is None:
        tile_h = _choose_tile(H, k1_row_bytes, budget)
    assert H % tile_h == 0
    n_rows = H // tile_h

    # ---- kernel-2 tiling + halo granularity -----------------------------------
    if H % 16 == 0:
        halo = 16
    elif H % 8 == 0:
        halo = 8
    else:
        halo = H                                        # no row tiling possible
    k2_row_bytes = W * (4 * 12 + 2 * 8)
    if tile_h2 is None:
        tile_h2 = _choose_tile(H, k2_row_bytes, budget, steps=(halo,)) if halo != H else H
    assert H % tile_h2 == 0 and (tile_h2 % halo == 0 or tile_h2 == H)
    n2 = H // tile_h2
    halo_blk = max(tile_h2 // halo, 1)
    n_halo = max(H // halo, 1)

    def _ok16(n):
        return n % 16 == 0 or n == H
    pred_dtype = (jnp.bfloat16
                  if (_ok16(tile_h) and _ok16(tile_h2) and _ok16(halo))
                  else jnp.float32)
    pred_bytes = jnp.dtype(pred_dtype).itemsize

    # ---- kernel 1: per-tile SoftCE/Dice partials + argmax map -----------------
    stats, pred = pl.pallas_call(
        _main_stats_kernel,
        out_shape=(
            jax.ShapeDtypeStruct((B, n_rows, 8, 128), jnp.float32),
            jax.ShapeDtypeStruct((B, H, W), pred_dtype),
        ),
        grid=(B, n_rows),
        in_specs=[
            pl.BlockSpec((1, C, tile_h, W), lambda b, r: (b, 0, r, 0)),
            pl.BlockSpec((1, tile_h, W), lambda b, r: (b, r, 0)),
        ],
        out_specs=[
            pl.BlockSpec((1, 1, 8, 128), lambda b, r: (b, r, 0, 0)),
            pl.BlockSpec((1, tile_h, W), lambda b, r: (b, r, 0)),
        ],
        compiler_params=pltpu.CompilerParams(
            dimension_semantics=("parallel", "parallel"),
            vmem_limit_bytes=vmem_limit),
        cost_estimate=pl.CostEstimate(
            flops=int(20 * B * C * H * W),
            transcendentals=int(B * H * W * (C + 2)),
            bytes_accessed=int(B * C * H * W * itemsize + B * H * W * 4
                               + B * H * W * pred_bytes
                               + B * n_rows * 8 * 128 * 4)),
    )(logits, targets)

    # ---- kernel 2: boundary maps + BCE, row-tiled with a 1-row halo -----------
    if W % 128 == 0:
        Wp, tgt2, pred2 = W, targets, pred
    else:
        # TODO(synk): narrow-W fallback keeps pltpu.roll on a full lane width;
        # 128-aligned production widths skip this pad entirely.
        Wp = -(-W // 128) * 128
        tgt2 = jnp.pad(targets, ((0, 0), (0, 0), (0, Wp - W)))
        pred2 = jnp.pad(pred, ((0, 0), (0, 0), (0, Wp - W)))

    main_map = lambda b, r: (b, r, 0)
    top_map = lambda b, r: (b, jnp.maximum(r * halo_blk - 1, 0), 0)
    bot_map = lambda b, r: (b, jnp.minimum((r + 1) * halo_blk, n_halo - 1), 0)

    edge_stats = pl.pallas_call(
        functools.partial(_edge_bce_kernel, w_true=W),
        out_shape=jax.ShapeDtypeStruct((B, n2, 8, 128), jnp.float32),
        grid=(B, n2),
        in_specs=[
            pl.BlockSpec((1, tile_h2, Wp), main_map),
            pl.BlockSpec((1, halo, Wp), top_map),
            pl.BlockSpec((1, halo, Wp), bot_map),
            pl.BlockSpec((1, tile_h2, Wp), main_map),
            pl.BlockSpec((1, halo, Wp), top_map),
            pl.BlockSpec((1, halo, Wp), bot_map),
        ],
        out_specs=pl.BlockSpec((1, 1, 8, 128), lambda b, r: (b, r, 0, 0)),
        compiler_params=pltpu.CompilerParams(
            dimension_semantics=("parallel", "parallel"),
            vmem_limit_bytes=vmem_limit),
        cost_estimate=pl.CostEstimate(
            flops=int(40 * B * H * Wp),
            transcendentals=0,
            bytes_accessed=int(B * H * Wp * (4 + pred_bytes)
                               + B * n2 * 2 * halo * Wp * (4 + pred_bytes)
                               + B * n2 * 8 * 128 * 4)),
    )(tgt2, tgt2, tgt2, pred2, pred2, pred2)

    # ---- scalar epilogue -------------------------------------------------------
    n_pix = float(B * H * W)
    nll_mean = jnp.sum(stats[:, :, 0, 0]) / n_pix
    smooth_mean = jnp.sum(stats[:, :, 0, 1]) / n_pix
    # SoftCrossEntropyLoss (smooth_factor=0.05, ignore_index=255, reduction=mean)
    ce = (1.0 - SMOOTH_FACTOR) * nll_mean + (SMOOTH_FACTOR / C) * smooth_mean

    inter = jnp.sum(stats[:, :, 1, :C], axis=(0, 1))
    card = jnp.sum(stats[:, :, 2, :C], axis=(0, 1))
    tsum = jnp.sum(stats[:, :, 3, :C], axis=(0, 1))
    # DiceLoss (multiclass, from_logits=True, smooth=0.05, ignore_index=255)
    score = (2.0 * inter + DICE_SMOOTH) / jnp.maximum(card + DICE_SMOOTH, DICE_EPS)
    dice = jnp.mean((1.0 - score) * (tsum > 0).astype(jnp.float32))

    edge = jnp.sum(edge_stats[:, :, 0, 0]) / n_pix      # BCE reduction='mean'
    main = ce + dice                                    # JointLoss weights 1, 1
    return (main + edge * edge_factor) / (edge_factor + 1.0)


if __name__ == "__main__":
    key = jax.random.PRNGKey(0)
    k1, k2 = jax.random.split(key)
    B, C, H, W = 2, 4, 32, 128
    logits = jax.random.normal(k1, (B, C, H, W), dtype=jnp.float32)
    targets = jax.random.randint(k2, (B, H, W), 0, C, dtype=jnp.int32)
    # a few ignore_index pixels to exercise the masking path
    targets = targets.at[0, 0, :8].set(IGNORE_INDEX)

    # tile_h=16 -> 2 row-tiles per image in kernel 1;
    # tile_h2=16 -> 2 row-tiles per image in kernel 2 (halo path exercised).
    loss = edge_loss(logits, targets, tile_h=16, tile_h2=16)
    jax.block_until_ready(loss)
    print("KERNEL_OK")
</pallas_src>

<mosaic_0001>
module attributes {stable_mosaic.version = 11 : i64} {
  func.func @_main_stats_kernel(%arg0: i32, %arg1: i32, %arg2: memref<1x4x16x128xf32, #tpu.memory_space<vmem>>, %arg3: memref<1x16x128xi32, #tpu.memory_space<vmem>>, %arg4: memref<1x1x8x128xf32, #tpu.memory_space<vmem>>, %arg5: memref<1x16x128xbf16, #tpu.memory_space<vmem>>) attributes {dimension_semantics = [#tpu.dimension_semantics<parallel>, #tpu.dimension_semantics<parallel>], iteration_bounds = array<i64: 2, 2>, scalar_prefetch = 0 : i64, scratch_operands = 0 : i64, tpu.core_type = #tpu.core_type<tc>, window_params = [{transform_indices = @transform_0, window_bounds = array<i64: 1, 4, 16, 128>}, {transform_indices = @transform_1, window_bounds = array<i64: 1, 16, 128>}, {transform_indices = @transform_2, window_bounds = array<i64: 1, 1, 8, 128>}, {transform_indices = @transform_3, window_bounds = array<i64: 1, 16, 128>}]} {
    %c0 = arith.constant 0 : index
    %c0_0 = arith.constant 0 : index
    %c0_1 = arith.constant 0 : index
    %c0_2 = arith.constant 0 : index
    %0 = vector.load %arg2[%c0, %c0_0, %c0_1, %c0_2] : memref<1x4x16x128xf32, #tpu.memory_space<vmem>>, vector<1x4x16x128xf32>
    %1 = vector.shape_cast %0 : vector<1x4x16x128xf32> to vector<4x16x128xf32>
    %c0_3 = arith.constant 0 : index
    %c0_4 = arith.constant 0 : index
    %c0_5 = arith.constant 0 : index
    %2 = vector.load %arg3[%c0_3, %c0_4, %c0_5] : memref<1x16x128xi32, #tpu.memory_space<vmem>>, vector<1x16x128xi32>
    %3 = vector.shape_cast %2 : vector<1x16x128xi32> to vector<16x128xi32>
    %4 = vector.extract_strided_slice %1 {offsets = [0, 0, 0], sizes = [1, 16, 128], strides = [1, 1, 1]} : vector<4x16x128xf32> to vector<1x16x128xf32>
    %5 = vector.shape_cast %4 : vector<1x16x128xf32> to vector<16x128xf32>
    %cst = arith.constant 0.000000e+00 : f32
    %6 = vector.broadcast %cst : f32 to vector<16x128xf32>
    %7 = vector.extract_strided_slice %1 {offsets = [1, 0, 0], sizes = [1, 16, 128], strides = [1, 1, 1]} : vector<4x16x128xf32> to vector<1x16x128xf32>
    %8 = vector.shape_cast %7 : vector<1x16x128xf32> to vector<16x128xf32>
    %9 = arith.cmpf ogt, %8, %5 : vector<16x128xf32>
    %10 = arith.select %9, %8, %5 : vector<16x128xi1>, vector<16x128xf32>
    %cst_6 = arith.constant 1.000000e+00 : f32
    %11 = vector.broadcast %cst_6 : f32 to vector<16x128xf32>
    %12 = arith.select %9, %11, %6 : vector<16x128xi1>, vector<16x128xf32>
    %13 = vector.extract_strided_slice %1 {offsets = [2, 0, 0], sizes = [1, 16, 128], strides = [1, 1, 1]} : vector<4x16x128xf32> to vector<1x16x128xf32>
    %14 = vector.shape_cast %13 : vector<1x16x128xf32> to vector<16x128xf32>
    %15 = arith.cmpf ogt, %14, %10 : vector<16x128xf32>
    %16 = arith.select %15, %14, %10 : vector<16x128xi1>, vector<16x128xf32>
    %cst_7 = arith.constant 2.000000e+00 : f32
    %17 = vector.broadcast %cst_7 : f32 to vector<16x128xf32>
    %18 = arith.select %15, %17, %12 : vector<16x128xi1>, vector<16x128xf32>
    %19 = vector.extract_strided_slice %1 {offsets = [3, 0, 0], sizes = [1, 16, 128], strides = [1, 1, 1]} : vector<4x16x128xf32> to vector<1x16x128xf32>
    %20 = vector.shape_cast %19 : vector<1x16x128xf32> to vector<16x128xf32>
    %21 = arith.cmpf ogt, %20, %16 : vector<16x128xf32>
    %22 = arith.select %21, %20, %16 : vector<16x128xi1>, vector<16x128xf32>
    %cst_8 = arith.constant 3.000000e+00 : f32
    %23 = vector.broadcast %cst_8 : f32 to vector<16x128xf32>
    %24 = arith.select %21, %23, %18 : vector<16x128xi1>, vector<16x128xf32>
    %25 = arith.truncf %24 : vector<16x128xf32> to vector<16x128xbf16>
    %c0_9 = arith.constant 0 : index
    %c0_10 = arith.constant 0 : index
    %c0_11 = arith.constant 0 : index
    %26 = vector.load %arg5[%c0_9, %c0_10, %c0_11] : memref<1x16x128xbf16, #tpu.memory_space<vmem>>, vector<1x16x128xbf16>
    %27 = vector.shape_cast %26 : vector<1x16x128xbf16> to vector<16x128xbf16>
    %28 = vector.shape_cast %25 : vector<16x128xbf16> to vector<1x16x128xbf16>
    tpu.vector_store %arg5[%c0_9, %c0_10, %c0_11], %28 {strides = array<i32>} : memref<1x16x128xbf16, #tpu.memory_space<vmem>>, vector<1x16x128xbf16>,
    %29 = vector.shape_cast %22 : vector<16x128xf32> to vector<1x16x128xf32>
    %30 = vector.broadcast %29 : vector<1x16x128xf32> to vector<4x16x128xf32>
    %31 = arith.subf %1, %30 : vector<4x16x128xf32>
    %32 = math.exp %31 : vector<4x16x128xf32>
    %cst_12 = arith.constant dense<0.000000e+00> : vector<16x128xf32>
    %33 = vector.multi_reduction <add>, %32, %cst_12 [0] : vector<4x16x128xf32> to vector<16x128xf32>
    %34 = vector.shape_cast %33 : vector<16x128xf32> to vector<1x16x128xf32>
    %35 = math.log %34 : vector<1x16x128xf32>
    %36 = vector.shape_cast %35 : vector<1x16x128xf32> to vector<16x128xf32>
    %37 = tpu.reciprocal %34 : vector<1x16x128xf32> -> vector<1x16x128xf32>
    %38 = vector.broadcast %37 : vector<1x16x128xf32> to vector<4x16x128xf32>
    %39 = arith.mulf %32, %38 : vector<4x16x128xf32>
    %c255_i32 = arith.constant 255 : i32
    %40 = vector.broadcast %c255_i32 : i32 to vector<16x128xi32>
    %41 = arith.cmpi eq, %3, %40 : vector<16x128xi32>
    %cst_13 = arith.constant dense<true> : vector<16x128xi1>
    %42 = arith.xori %41, %cst_13 : vector<16x128xi1>
    %43 = arith.extui %42 : vector<16x128xi1> to vector<16x128xi32>
    %44 = arith.sitofp %43 : vector<16x128xi32> to vector<16x128xf32>
    %c0_i32 = arith.constant 0 : i32
    %45 = vector.broadcast %c0_i32 : i32 to vector<16x128xi32>
    %46 = arith.select %41, %45, %3 : vector<16x128xi1>, vector<16x128xi32>
    %47 = tpu.iota {dimensions = array<i32: 0>} : vector<4x16x128xi32>
    %48 = vector.shape_cast %46 : vector<16x128xi32> to vector<1x16x128xi32>
    %49 = vector.broadcast %48 : vector<1x16x128xi32> to vector<4x16x128xi32>
    %50 = arith.cmpi eq, %47, %49 : vector<4x16x128xi32>
    %cst_14 = arith.constant 0.000000e+00 : f32
    %51 = vector.broadcast %cst_14 : f32 to vector<4x16x128xf32>
    %52 = arith.select %50, %31, %51 : vector<4x16x128xi1>, vector<4x16x128xf32>
    %cst_15 = arith.constant dense<0.000000e+00> : vector<16x128xf32>
    %53 = vector.multi_reduction <add>, %52, %cst_15 [0] : vector<4x16x128xf32> to vector<16x128xf32>
    %54 = arith.subf %36, %53 : vector<16x128xf32>
    %cst_16 = arith.constant 4.000000e+00 : f32
    %55 = vector.broadcast %cst_16 : f32 to vector<16x128xf32>
    %56 = arith.mulf %55, %36 : vector<16x128xf32>
    %cst_17 = arith.constant dense<0.000000e+00> : vector<16x128xf32>
    %57 = vector.multi_reduction <add>, %31, %cst_17 [0] : vector<4x16x128xf32> to vector<16x128xf32>
    %58 = arith.subf %56, %57 : vector<16x128xf32>
    %59 = arith.mulf %54, %44 : vector<16x128xf32>
    %60 = vector.shape_cast %59 : vector<16x128xf32> to vector<1x16x128xf32>
    %cst_18 = arith.constant dense<0.000000e+00> : vector<1xf32>
    %61 = vector.multi_reduction <add>, %60, %cst_18 [1, 2] : vector<1x16x128xf32> to vector<1xf32>
    %62 = vector.shape_cast %61 : vector<1xf32> to vector<1x1x1xf32>
    %63 = vector.extract %62[0, 0, 0] : f32 from vector<1x1x1xf32>
    %64 = arith.mulf %58, %44 : vector<16x128xf32>
    %65 = vector.shape_cast %64 : vector<16x128xf32> to vector<1x16x128xf32>
    %cst_19 = arith.constant dense<0.000000e+00> : vector<1xf32>
    %66 = vector.multi_reduction <add>, %65, %cst_19 [1, 2] : vector<1x16x128xf32> to vector<1xf32>
    %67 = vector.shape_cast %66 : vector<1xf32> to vector<1x1x1xf32>
    %68 = vector.extract %67[0, 0, 0] : f32 from vector<1x1x1xf32>
    %69 = vector.shape_cast %44 : vector<16x128xf32> to vector<1x16x128xf32>
    %70 = vector.broadcast %69 : vector<1x16x128xf32> to vector<4x16x128xf32>
    %71 = arith.mulf %39, %70 : vector<4x16x128xf32>
    %cst_20 = arith.constant 0.000000e+00 : f32
    %72 = vector.broadcast %cst_20 : f32 to vector<4x16x128xf32>
    %73 = arith.select %50, %71, %72 : vector<4x16x128xi1>, vector<4x16x128xf32>
    %cst_21 = arith.constant dense<0.000000e+00> : vector<4x16xf32>
    %74 = vector.multi_reduction <add>, %73, %cst_21 [2] : vector<4x16x128xf32> to vector<4x16xf32>
    %cst_22 = arith.constant dense<0.000000e+00> : vector<4xf32>
    %75 = vector.multi_reduction <add>, %74, %cst_22 [1] : vector<4x16xf32> to vector<4xf32>
    %76 = vector.shape_cast %75 : vector<4xf32> to vector<4x1xf32>
    %cst_23 = arith.constant dense<0.000000e+00> : vector<4x16xf32>
    %77 = vector.multi_reduction <add>, %71, %cst_23 [2] : vector<4x16x128xf32> to vector<4x16xf32>
    %cst_24 = arith.constant dense<0.000000e+00> : vector<4xf32>
    %78 = vector.multi_reduction <add>, %77, %cst_24 [1] : vector<4x16xf32> to vector<4xf32>
    %79 = vector.shape_cast %78 : vector<4xf32> to vector<4x1xf32>
    %80 = vector.shape_cast %44 : vector<16x128xf32> to vector<1x16x128xf32>
    %cst_25 = arith.constant 0.000000e+00 : f32
    %81 = vector.shape_cast %80 : vector<1x16x128xf32> to vector<1x16x128xf32>
    %82 = vector.broadcast %81 : vector<1x16x128xf32> to vector<4x16x128xf32>
    %83 = vector.broadcast %cst_25 : f32 to vector<4x16x128xf32>
    %84 = arith.select %50, %82, %83 : vector<4x16x128xi1>, vector<4x16x128xf32>
    %cst_26 = arith.constant dense<0.000000e+00> : vector<4x16xf32>
    %85 = vector.multi_reduction <add>, %84, %cst_26 [2] : vector<4x16x128xf32> to vector<4x16xf32>
    %cst_27 = arith.constant dense<0.000000e+00> : vector<4xf32>
    %86 = vector.multi_reduction <add>, %85, %cst_27 [1] : vector<4x16xf32> to vector<4xf32>
    %87 = vector.shape_cast %86 : vector<4xf32> to vector<4x1xf32>
    %88 = arith.addf %79, %87 : vector<4x1xf32>
    %89 = tpu.iota {dimensions = array<i32: 1>} : vector<4x128xi32>
    %90 = tpu.iota {dimensions = array<i32: 0>} : vector<4x128xi32>
    %91 = arith.cmpi eq, %89, %90 : vector<4x128xi32>
    %92 = arith.extui %91 : vector<4x128xi1> to vector<4x128xi32>
    %93 = arith.sitofp %92 : vector<4x128xi32> to vector<4x128xf32>
    %94 = vector.broadcast %76 : vector<4x1xf32> to vector<4x128xf32>
    %95 = arith.mulf %94, %93 : vector<4x128xf32>
    %cst_28 = arith.constant dense<0.000000e+00> : vector<128xf32>
    %96 = vector.multi_reduction <add>, %95, %cst_28 [0] : vector<4x128xf32> to vector<128xf32>
    %97 = vector.shape_cast %96 : vector<128xf32> to vector<1x128xf32>
    %98 = vector.broadcast %88 : vector<4x1xf32> to vector<4x128xf32>
    %99 = arith.mulf %98, %93 : vector<4x128xf32>
    %cst_29 = arith.constant dense<0.000000e+00> : vector<128xf32>
    %100 = vector.multi_reduction <add>, %99, %cst_29 [0] : vector<4x128xf32> to vector<128xf32>
    %101 = vector.shape_cast %100 : vector<128xf32> to vector<1x128xf32>
    %102 = vector.broadcast %87 : vector<4x1xf32> to vector<4x128xf32>
    %103 = arith.mulf %102, %93 : vector<4x128xf32>
    %cst_30 = arith.constant dense<0.000000e+00> : vector<128xf32>
    %104 = vector.multi_reduction <add>, %103, %cst_30 [0] : vector<4x128xf32> to vector<128xf32>
    %105 = vector.shape_cast %104 : vector<128xf32> to vector<1x128xf32>
    %106 = tpu.iota {dimensions = array<i32: 0>} : vector<8x128xi32>
    %107 = tpu.iota {dimensions = array<i32: 1>} : vector<8x128xi32>
    %c0_i32_31 = arith.constant 0 : i32
    %108 = vector.broadcast %c0_i32_31 : i32 to vector<8x128xi32>
    %109 = arith.cmpi eq, %106, %108 : vector<8x128xi32>
    %c0_i32_32 = arith.constant 0 : i32
    %110 = vector.broadcast %c0_i32_32 : i32 to vector<8x128xi32>
    %111 = arith.cmpi eq, %107, %110 : vector<8x128xi32>
    %112 = arith.andi %109, %111 : vector<8x128xi1>
    %cst_33 = arith.constant 0.000000e+00 : f32
    %113 = vector.broadcast %63 : f32 to vector<8x128xf32>
    %114 = vector.broadcast %cst_33 : f32 to vector<8x128xf32>
    %115 = arith.select %112, %113, %114 : vector<8x128xi1>, vector<8x128xf32>
    %c0_i32_34 = arith.constant 0 : i32
    %116 = vector.broadcast %c0_i32_34 : i32 to vector<8x128xi32>
    %117 = arith.cmpi eq, %106, %116 : vector<8x128xi32>
    %c1_i32 = arith.constant 1 : i32
    %118 = vector.broadcast %c1_i32 : i32 to vector<8x128xi32>
    %119 = arith.cmpi eq, %107, %118 : vector<8x128xi32>
    %120 = arith.andi %117, %119 : vector<8x128xi1>
    %cst_35 = arith.constant 0.000000e+00 : f32
    %121 = vector.broadcast %68 : f32 to vector<8x128xf32>
    %122 = vector.broadcast %cst_35 : f32 to vector<8x128xf32>
    %123 = arith.select %120, %121, %122 : vector<8x128xi1>, vector<8x128xf32>
    %124 = arith.addf %115, %123 : vector<8x128xf32>
    %c1_i32_36 = arith.constant 1 : i32
    %125 = vector.broadcast %c1_i32_36 : i32 to vector<8x128xi32>
    %126 = arith.cmpi eq, %106, %125 : vector<8x128xi32>
    %cst_37 = arith.constant 0.000000e+00 : f32
    %127 = vector.shape_cast %97 : vector<1x128xf32> to vector<1x128xf32>
    %128 = vector.broadcast %127 : vector<1x128xf32> to vector<8x128xf32>
    %129 = vector.broadcast %cst_37 : f32 to vector<8x128xf32>
    %130 = arith.select %126, %128, %129 : vector<8x128xi1>, vector<8x128xf32>
    %131 = arith.addf %124, %130 : vector<8x128xf32>
    %c2_i32 = arith.constant 2 : i32
    %132 = vector.broadcast %c2_i32 : i32 to vector<8x128xi32>
    %133 = arith.cmpi eq, %106, %132 : vector<8x128xi32>
    %cst_38 = arith.constant 0.000000e+00 : f32
    %134 = vector.shape_cast %101 : vector<1x128xf32> to vector<1x128xf32>
    %135 = vector.broadcast %134 : vector<1x128xf32> to vector<8x128xf32>
    %136 = vector.broadcast %cst_38 : f32 to vector<8x128xf32>
    %137 = arith.select %133, %135, %136 : vector<8x128xi1>, vector<8x128xf32>
    %138 = arith.addf %131, %137 : vector<8x128xf32>
    %c3_i32 = arith.constant 3 : i32
    %139 = vector.broadcast %c3_i32 : i32 to vector<8x128xi32>
    %140 = arith.cmpi eq, %106, %139 : vector<8x128xi32>
    %cst_39 = arith.constant 0.000000e+00 : f32
    %141 = vector.shape_cast %105 : vector<1x128xf32> to vector<1x128xf32>
    %142 = vector.broadcast %141 : vector<1x128xf32> to vector<8x128xf32>
    %143 = vector.broadcast %cst_39 : f32 to vector<8x128xf32>
    %144 = arith.select %140, %142, %143 : vector<8x128xi1>, vector<8x128xf32>
    %145 = arith.addf %138, %144 : vector<8x128xf32>
    %c0_40 = arith.constant 0 : index
    %c0_41 = arith.constant 0 : index
    %c0_42 = arith.constant 0 : index
    %c0_43 = arith.constant 0 : index
    %146 = vector.load %arg4[%c0_40, %c0_41, %c0_42, %c0_43] : memref<1x1x8x128xf32, #tpu.memory_space<vmem>>, vector<1x1x8x128xf32>
    %147 = vector.shape_cast %146 : vector<1x1x8x128xf32> to vector<8x128xf32>
    %148 = vector.shape_cast %145 : vector<8x128xf32> to vector<1x1x8x128xf32>
    tpu.vector_store %arg4[%c0_40, %c0_41, %c0_42, %c0_43], %148 {strides = array<i32>} : memref<1x1x8x128xf32, #tpu.memory_space<vmem>>, vector<1x1x8x128xf32>,
    return
  }
  func.func @transform_0(%arg0: i32, %arg1: i32) -> (i32, i32, i32, i32) {
    %c0_i32 = arith.constant 0 : i32
    %c0_i32_0 = arith.constant 0 : i32
    %c0_i32_1 = arith.constant 0 : i32
    return %arg0, %c0_i32, %arg1, %c0_i32_0 : i32, i32, i32, i32
  }
  func.func @transform_1(%arg0: i32, %arg1: i32) -> (i32, i32, i32) {
    %c0_i32 = arith.constant 0 : i32
    %c0_i32_0 = arith.constant 0 : i32
    return %arg0, %arg1, %c0_i32 : i32, i32, i32
  }
  func.func @transform_2(%arg0: i32, %arg1: i32) -> (i32, i32, i32, i32) {
    %c0_i32 = arith.constant 0 : i32
    %c0_i32_0 = arith.constant 0 : i32
    %c0_i32_1 = arith.constant 0 : i32
    return %arg0, %arg1, %c0_i32, %c0_i32_0 : i32, i32, i32, i32
  }
  func.func @transform_3(%arg0: i32, %arg1: i32) -> (i32, i32, i32) {
    %c0_i32 = arith.constant 0 : i32
    %c0_i32_0 = arith.constant 0 : i32
    return %arg0, %arg1, %c0_i32 : i32, i32, i32
  }
}

</mosaic_0001>

<llo_original>
// kernel: tpu_custom_call.1
$region0: #{tpu_custom_call.1}
  #allocation0 [shape = 'u32[]', space=smem, size = 0x4, offset = 0x4, fixed_abs, tag = 'smem constant byte address 0x4 - core index']
  #allocation1 [shape = 'u32[144,128]{1,0:T(1,128)}', space=vmem, size = 0x12000, scoped, tag = 'internal scratch']
  #allocation10 [shape = 's32[]', space=sflag, size = 0x4, offset = 0, fixed_abs, tag = 'sflag constant byte address 0x0 - dummy sync flag']
  %s0 = inlined_call_operand.hbm [shape: f32[2,4,32,128], index: 0, kind: input, shape index: {}]
  %s1 = inlined_call_operand.hbm [shape: s32[2,32,128], index: 1, kind: input, shape index: {}]
  %s2 = inlined_call_operand.hbm [shape: f32[2,2,8,128], index: 2, kind: output, shape index: {0}]
  %s3 = inlined_call_operand.hbm [shape: bf16[2,32,128], index: 3, kind: output, shape index: {1}]
  %4 = xla_tuple %s2, %s3
  %s5 = sld [smem:[#allocation0]]
  $region57: #{tpu_custom_call.1} parent=0
    _
  %s7 = ssub.s32 1, %s5
  %s8 = scalar_select 0, %s7, %s5
  $region1: #{tpu_custom_call.1} parent=0
    #allocation2 [shape = 'u8[65536]{0}', space=vmem, size = 0x10000, scoped, tag = 'input window, operand 0']
    #allocation3 [shape = 's32[2]{0}', space=sflag, size = 0x8, scoped, tag = 'scoped memory for tpu_custom_call.1']
    #allocation4 [shape = 's32[2]{0}', space=sflag, size = 0x8, scoped, tag = 'scoped memory for tpu_custom_call.1']
    #allocation5 [shape = 'u8[16384]{0}', space=vmem, size = 0x4000, scoped, tag = 'input window, operand 1']
    #allocation6 [shape = 's32[2]{0}', space=sflag, size = 0x8, scoped, tag = 'scoped memory for tpu_custom_call.1']
    #allocation7 [shape = 'u8[8192]{0}', space=vmem, size = 0x2000, scoped, tag = 'output window, operand 0']
    #allocation8 [shape = 'u8[8192]{0}', space=vmem, size = 0x2000, scoped, tag = 'output window, operand 1']
    #allocation9 [shape = 's32[2]{0}', space=sflag, size = 0x8, scoped, tag = 'scoped memory for tpu_custom_call.1']
    %9 = vsyncpa [#allocation3], 0
    %s10 = scalar_lea.sflag [#allocation3], 1
    %11 = vsyncpa %s10, 0
    %12 = vsyncpa [#allocation6], 0
    %s13 = scalar_lea.sflag [#allocation6], 1
    %14 = vsyncpa %s13, 0
    %15 = vsyncpa [#allocation4], 0
    %s16 = scalar_lea.sflag [#allocation4], 1
    %17 = vsyncpa %s16, 0
    %18 = vsyncpa [#allocation9], 0
    %s19 = scalar_lea.sflag [#allocation9], 1
    %20 = vsyncpa %s19, 0
    loop: start=0, step=1, limit=6
    $region2: #{tpu_custom_call.1} parent=1 // loop_pre_header
      _
    $region3: #{tpu_custom_call.1} parent=1 // loop_header
      %s22 = sphi 0, %s26
      %p23 = scmp.ge.s32.totalorder %s22, 6
      %s29 = sphi 0, %s41
      %s30 = sphi 0, %s37
      %s31 = sphi 0, %s29
      %s32 = sphi 0, %s30
      %s33 = sphi 0, %s31
      %s34 = sphi 0, %s32
      %s46 = sphi 0, %s48
      %s49 = sphi 0, %s46
      %s50 = sphi 0, %s49
      %s66 = sphi 0, %s50
      %s74 = sphi 0, %s76
      %s77 = sphi 0, %s74
      %s78 = sphi 0, %s77
      %s94 = sphi 0, %s78
      %s102 = sphi 0, %s104
      %s105 = sphi 0, %s102
      %s106 = sphi 0, %s105
      %s122 = sphi 0, %s106
      %s130 = sphi 0, %s132
      %s133 = sphi 0, %s130
      %s134 = sphi 0, %s133
      %s150 = sphi 0, %s134
    $region4: #{tpu_custom_call.1} parent=1 // loop_header_branch
      %25 = sbr.rel (%p23) target = $region8
    $region5: #{tpu_custom_call.1} parent=1 // loop_body
      %s27 = ssub.s32 %s22, 1
      %s28 = ssub.s32 %s22, 2
      %s35 = sadd.s32 1, %s30
      %p36 = scmp.ge.s32.totalorder %s35, 2
      %s37 = scalar_select %p36, 0, %s35
      %s38 = sadd.s32 1, %s29
      %s39 = scalar_select %p36, %s38, %s29
      %p40 = scmp.ge.s32.totalorder %s39, 2
      %s41 = scalar_select %p40, 0, %s39
      %s42 = ssub.s32 %s29, %s41
      %s43 = ssub.s32 %s30, %s37
      %s44 = sor.u32 %s42, %s43
      %p45 = scmp.eq.s32.totalorder %s44, 0
      %s47 = sadd.s32 %s46, 1
      %s48 = scalar_select %p45, %s46, %s47
      %p51 = pneg %p45
      %p52 = scmp.eq.s32.totalorder %s22, 3
      %p53 = por %p51, %p52
      %p54 = scmp.ne.s32.totalorder %s46, %s49
      %p55 = scmp.eq.s32.totalorder %s22, 0
      %p56 = por %p54, %p55
      %p57 = scmp.ne.s32.totalorder %s46, %s49
      %p58 = scmp.eq.s32.totalorder %s27, 3
      %p59 = por %p57, %p58
      %p60 = scmp.ne.s32.totalorder %s49, %s50
      %p61 = scmp.eq.s32.totalorder %s27, 0
      %p62 = por %p60, %p61
      %p63 = scmp.ne.s32.totalorder %s49, %s50
      %p64 = scmp.eq.s32.totalorder %s28, 3
      %p65 = por %p63, %p64
      %p67 = scmp.ne.s32.totalorder %s50, %s66
      %p68 = scmp.eq.s32.totalorder %s28, 0
      %p69 = por %p67, %p68
      %s70 = ssub.s32 %s29, %s41
      %s71 = ssub.s32 %s30, %s37
      %s72 = sor.u32 %s70, %s71
      %p73 = scmp.eq.s32.totalorder %s72, 0
      %s75 = sadd.s32 %s74, 1
      %s76 = scalar_select %p73, %s74, %s75
      %p79 = pneg %p73
      %p80 = scmp.eq.s32.totalorder %s22, 3
      %p81 = por %p79, %p80
      %p82 = scmp.ne.s32.totalorder %s74, %s77
      %p83 = scmp.eq.s32.totalorder %s22, 0
      %p84 = por %p82, %p83
      %p85 = scmp.ne.s32.totalorder %s74, %s77
      %p86 = scmp.eq.s32.totalorder %s27, 3
      %p87 = por %p85, %p86
      %p88 = scmp.ne.s32.totalorder %s77, %s78
      %p89 = scmp.eq.s32.totalorder %s27, 0
      %p90 = por %p88, %p89
      %p91 = scmp.ne.s32.totalorder %s77, %s78
      %p92 = scmp.eq.s32.totalorder %s28, 3
      %p93 = por %p91, %p92
      %p95 = scmp.ne.s32.totalorder %s78, %s94
      %p96 = scmp.eq.s32.totalorder %s28, 0
      %p97 = por %p95, %p96
      %s98 = ssub.s32 %s29, %s41
      %s99 = ssub.s32 %s30, %s37
      %s100 = sor.u32 %s98, %s99
      %p101 = scmp.eq.s32.totalorder %s100, 0
      %s103 = sadd.s32 %s102, 1
      %s104 = scalar_select %p101, %s102, %s103
      %p107 = pneg %p101
      %p108 = scmp.eq.s32.totalorder %s22, 3
      %p109 = por %p107, %p108
      %p110 = scmp.ne.s32.totalorder %s102, %s105
      %p111 = scmp.eq.s32.totalorder %s22, 0
      %p112 = por %p110, %p111
      %p113 = scmp.ne.s32.totalorder %s102, %s105
      %p114 = scmp.eq.s32.totalorder %s27, 3
      %p115 = por %p113, %p114
      %p116 = scmp.ne.s32.totalorder %s105, %s106
      %p117 = scmp.eq.s32.totalorder %s27, 0
      %p118 = por %p116, %p117
      %p119 = scmp.ne.s32.totalorder %s105, %s106
      %p120 = scmp.eq.s32.totalorder %s28, 3
      %p121 = por %p119, %p120
      %p123 = scmp.ne.s32.totalorder %s106, %s122
      %p124 = scmp.eq.s32.totalorder %s28, 0
      %p125 = por %p123, %p124
      %s126 = ssub.s32 %s29, %s41
      %s127 = ssub.s32 %s30, %s37
      %s128 = sor.u32 %s126, %s127
      %p129 = scmp.eq.s32.totalorder %s128, 0
      %s131 = sadd.s32 %s130, 1
      %s132 = scalar_select %p129, %s130, %s131
      %p135 = pneg %p129
      %p136 = scmp.eq.s32.totalorder %s22, 3
      %p137 = por %p135, %p136
      %p138 = scmp.ne.s32.totalorder %s130, %s133
      %p139 = scmp.eq.s32.totalorder %s22, 0
      %p140 = por %p138, %p139
      %p141 = scmp.ne.s32.totalorder %s130, %s133
      %p142 = scmp.eq.s32.totalorder %s27, 3
      %p143 = por %p141, %p142
      %p144 = scmp.ne.s32.totalorder %s133, %s134
      %p145 = scmp.eq.s32.totalorder %s27, 0
      %p146 = por %p144, %p145
      %p147 = scmp.ne.s32.totalorder %s133, %s134
      %p148 = scmp.eq.s32.totalorder %s28, 3
      %p149 = por %p147, %p148
      %p151 = scmp.ne.s32.totalorder %s134, %s150
      %p152 = scmp.eq.s32.totalorder %s28, 0
      %p153 = por %p151, %p152
      %p154 = scmp.le.s32.totalorder 1, %s22
      %p155 = scmp.lt.s32.totalorder %s22, 5
      %p156 = pnand %p154, %p155
      %p157 = pneg %p156
      // Predicated region
      $region9: #{tpu_custom_call.1} parent=5 // pred_check
        _
      $region10: #{tpu_custom_call.1} parent=5 // pred_check_branch
        %159 = sbr.rel (%p156) target = $region12
      $region11: #{tpu_custom_call.1} parent=5 // pred_region
        %s160 = ssub.s32 %s22, 1
      $region12: #{tpu_custom_call.1} parent=5 // pred_fallthru
        _
      %p161 = scmp.lt.s32.totalorder %s22, 4
      // Predicated region
      $region13: #{tpu_custom_call.1} parent=5 // pred_check
        %p162 = pneg %p161
      $region14: #{tpu_custom_call.1} parent=5 // pred_check_branch
        %164 = sbr.rel (%p162) target = $region16
      $region15: #{tpu_custom_call.1} parent=5 // pred_region
        // Predicated region
        $region17: #{tpu_custom_call.1} parent=15 // pred_check
          %p165 = pneg %p56
        $region18: #{tpu_custom_call.1} parent=15 // pred_check_branch
          %167 = sbr.rel (%p165) target = $region20
        $region19: #{tpu_custom_call.1} parent=15 // pred_region
          #allocation11 [shape = 'u32[6]{0}', space=smem, size = 0x18, scoped, tag = 'DMA stride descriptor']
          %s168 = sand.u32 %s46, 1
          %s169 = scalar_lea.sflag [#allocation3], %s168
          %s170 = sand.u32 %s46, 1
          %s171 = smul.addr %s170, 64
          %s172 = scalar_lea.vmem [#allocation2], %s171
          %s173 = smul.u32 2, %s30
          %s175 = ssub.s32 1024, 1024
          %176 = vsyncadd %s169, %s175
          %s177 = smul.addr %s29, 16
          %s178 = sadd.s32 %s173, %s177
          %s179 = smul.addr %s178, 128
          %s180 = scalar_lea.hbm %s0, %s179
          %s182 = sshll.u32 1, 14
          %s183 = sxor.u32 4294967295, %s182
          %s185 = sld [smem:[#allocation0]]
          %s186 = sadd.s32 2, %s185
          %s188 = sshll.u32 7, 26
          %s189 = sxor.u32 4294967295, %s188
          %s190 = sand.u32 0, %s189
          %s191 = sshll.u32 %s186, 26
          %s192 = sor.u32 %s190, %s191
          %s193 = sshll.u32 %s172, 4
          %s194 = int_to_ptr.vmem [resolvable:$true] %s193
          %200 = sst [smem:[#allocation11]] 512
          %s201 = scalar_lea.smem [#allocation11], 1
          %202 = sst [smem:[%s201]] 256
          %s203 = scalar_lea.smem [#allocation11], 2
          %204 = sst [smem:[%s203]] 2
          %s205 = scalar_lea.smem [#allocation11], 3
          %206 = sst [smem:[%s205]] 128
          %s207 = scalar_lea.smem [#allocation11], 4
          %208 = sst [smem:[%s207]] 128
          %s209 = scalar_lea.smem [#allocation11], 5
          %210 = sst [smem:[%s209]] 8
          %212 = dma.general %s180, 1024, %s194, %s169, 131072, [#allocation11], %s192, 0
        $region20: #{tpu_custom_call.1} parent=15 // pred_fallthru
          _
        // Predicated region
        $region21: #{tpu_custom_call.1} parent=15 // pred_check
          %p213 = pneg %p84
        $region22: #{tpu_custom_call.1} parent=15 // pred_check_branch
          %215 = sbr.rel (%p213) target = $region24
        $region23: #{tpu_custom_call.1} parent=15 // pred_region
          %s216 = sand.u32 %s74, 1
          %s217 = scalar_lea.sflag [#allocation6], %s216
          %s218 = sand.u32 %s74, 1
          %s219 = smul.addr %s218, 16
          %s220 = scalar_lea.vmem [#allocation5], %s219
          %s221 = smul.u32 2, %s30
          %s223 = ssub.s32 256, 256
          %224 = vsyncadd %s217, %s223
          %s225 = smul.addr %s29, 4
          %s226 = sadd.s32 %s221, %s225
          %s227 = smul.addr %s226, 128
          %s228 = scalar_lea.hbm %s1, %s227
          %s229 = sshll.u32 %s220, 4
          %s230 = int_to_ptr.vmem [resolvable:$true] %s229
          %235 = dma.hbm_to_vmem [thread:$0]  %s228, 256, %s230, %s217, 128, 128, 8
        $region24: #{tpu_custom_call.1} parent=15 // pred_fallthru
          _
      $region16: #{tpu_custom_call.1} parent=5 // pred_fallthru
        _
      %p236 = scmp.le.s32.totalorder 1, %s22
      %p237 = scmp.lt.s32.totalorder %s22, 5
      %p238 = pnand %p236, %p237
      %p239 = pneg %p238
      // Predicated region
      $region25: #{tpu_custom_call.1} parent=5 // pred_check
        _
      $region26: #{tpu_custom_call.1} parent=5 // pred_check_branch
        %241 = sbr.rel (%p238) target = $region28
      $region27: #{tpu_custom_call.1} parent=5 // pred_region
        %s242 = ssub.s32 %s22, 1
        %s243 = sand.u32 %s49, 1
        %s244 = scalar_lea.sflag [#allocation3], %s243
        %s245 = sand.u32 %s49, 1
        %s246 = smul.addr %s245, 64
        %s247 = scalar_lea.vmem [#allocation2], %s246
        // Predicated region
        $region29: #{tpu_custom_call.1} parent=27 // pred_check
          %p248 = pneg %p62
        $region30: #{tpu_custom_call.1} parent=27 // pred_check_branch
          %250 = sbr.rel (%p248) target = $region32
        $region31: #{tpu_custom_call.1} parent=27 // pred_region
          %251 = dma.done %s244, 1024
        $region32: #{tpu_custom_call.1} parent=27 // pred_fallthru
          _
        %s252 = sand.u32 %s77, 1
        %s253 = scalar_lea.sflag [#allocation6], %s252
        %s254 = sand.u32 %s77, 1
        %s255 = smul.addr %s254, 16
        %s256 = scalar_lea.vmem [#allocation5], %s255
        // Predicated region
        $region33: #{tpu_custom_call.1} parent=27 // pred_check
          %p257 = pneg %p90
        $region34: #{tpu_custom_call.1} parent=27 // pred_check_branch
          %259 = sbr.rel (%p257) target = $region36
        $region35: #{tpu_custom_call.1} parent=27 // pred_region
          %260 = dma.done %s253, 256
        $region36: #{tpu_custom_call.1} parent=27 // pred_fallthru
          _
        %s261 = sand.u32 %s49, 1
        %s262 = scalar_lea.sflag [#allocation3], %s261
        %s263 = sand.u32 %s49, 1
        %s264 = smul.addr %s263, 64
        %s265 = scalar_lea.vmem [#allocation2], %s264
        %p266 = pneg %p62
        %p267 = pneg %p59
        %s268 = sand.u32 %s77, 1
        %s269 = scalar_lea.sflag [#allocation6], %s268
        %s270 = sand.u32 %s77, 1
        %s271 = smul.addr %s270, 16
        %s272 = scalar_lea.vmem [#allocation5], %s271
        %p273 = pneg %p90
        %p274 = pneg %p87
        %p275 = pneg %p118
        %p276 = pneg %p115
        %s277 = sand.u32 %s105, 1
        %s278 = scalar_lea.sflag [#allocation4], %s277
        %s279 = sand.u32 %s105, 1
        %s280 = smul.addr %s279, 8
        %s281 = scalar_lea.vmem [#allocation7], %s280
        %p282 = pneg %p146
        %p283 = pneg %p143
        %s284 = sand.u32 %s133, 1
        %s285 = scalar_lea.sflag [#allocation9], %s284
        %s286 = sand.u32 %s133, 1
        %s287 = smul.addr %s286, 8
        %s288 = scalar_lea.vmem [#allocation8], %s287
        %s289 = smul.u32 2, %s32
        %s290 = smul.u32 2, %s32
        %s291 = smul.u32 2, %s32
        %v292 = vld [vmem:[%s247] sm:$0xff]
        %v293 = vld [vmem:[%s247 + $0x8] sm:$0xff]
        %v294 = vld [vmem:[%s247 + $0x10] sm:$0xff]
        %v295 = vld [vmem:[%s247 + $0x18] sm:$0xff]
        %v296 = vld [vmem:[%s247 + $0x20] sm:$0xff]
        %v297 = vld [vmem:[%s247 + $0x28] sm:$0xff]
        %v298 = vld [vmem:[%s247 + $0x30] sm:$0xff]
        %v299 = vld [vmem:[%s247 + $0x38] sm:$0xff]
        %v300 = vld [vmem:[%s256] sm:$0xff]
        %v301 = vld [vmem:[%s256 + $0x8] sm:$0xff]
        %vm302 = vcmp.gt.f32.partialorder %v294, %v292
        %vm303 = vcmp.gt.f32.partialorder %v295, %v293
        %v304 = vsel %vm302, %v294, %v292
        %v305 = vsel %vm303, %v295, %v293
        %v306 = vsel %vm302, 1.0, 0.0
        %v307 = vsel %vm303, 1.0, 0.0
        %vm308 = vcmp.gt.f32.partialorder %v296, %v304
        %vm309 = vcmp.gt.f32.partialorder %v297, %v305
        %v310 = vsel %vm308, %v296, %v304
        %v311 = vsel %vm309, %v297, %v305
        %v312 = vsel %vm308, 2.0, %v306
        %v313 = vsel %vm309, 2.0, %v307
        %vm314 = vcmp.gt.f32.partialorder %v298, %v310
        %vm315 = vcmp.gt.f32.partialorder %v299, %v311
        %v316 = vsel %vm314, %v298, %v310
        %v317 = vsel %vm315, %v299, %v311
        %v318 = vsel %vm314, 3.0, %v312
        %v319 = vsel %vm315, 3.0, %v313
        %v320 = vpack.c.bf16 %v319, %v318
        %v322 = vunpack.c.l.b16 %v320
        %v323 = vunpack.c.h.b16 %v320
        %v324 = vpack.c.b16 %v322, %v322
        %v325 = vpack.c.b16 %v323, %v323
        %328 = vst [vmem:[%s288] sm:$0xf] %v324
        %329 = vst [vmem:[%s288 + $0x4] sm:$0xf] %v325
        %v330 = vsub.f32 %v292, %v316
        %v331 = vsub.f32 %v293, %v317
        %v332 = vsub.f32 %v294, %v316
        %v333 = vsub.f32 %v295, %v317
        %v334 = vsub.f32 %v296, %v316
        %v335 = vsub.f32 %v297, %v317
        %v336 = vsub.f32 %v298, %v316
        %v337 = vsub.f32 %v299, %v317
        %v338 = vmul.f32 %v330, 1.442695
        %v339 = vpow.pop %v338
        %v340 = vmul.f32 %v331, 1.442695
        %v341 = vpow.pop %v340
        %v342 = vmul.f32 %v332, 1.442695
        %v343 = vpow.pop %v342
        %v344 = vmul.f32 %v333, 1.442695
        %v345 = vpow.pop %v344
        %v346 = vmul.f32 %v334, 1.442695
        %v347 = vpow.pop %v346
        %v348 = vmul.f32 %v335, 1.442695
        %v349 = vpow.pop %v348
        %v350 = vmul.f32 %v336, 1.442695
        %v351 = vpow.pop %v350
        %v352 = vmul.f32 %v337, 1.442695
        %v353 = vpow.pop %v352
        %v354 = vadd.f32 %v339, %v343
        %v355 = vadd.f32 %v354, %v347
        %v356 = vadd.f32 %v355, %v351
        %v357 = vadd.f32 %v341, %v345
        %v358 = vadd.f32 %v357, %v349
        %v359 = vadd.f32 %v358, %v353
        %v360 = vlog2.pop %v356
        %v361 = vmul.f32 %v360, 0.6931472
        %v362 = vlog2.pop %v359
        %v363 = vmul.f32 %v362, 0.6931472
        %v364 = vrcp.pop %v356
        %v365 = vrcp.pop %v359
        %v366 = vmul.f32 %v339, %v364
        %v367 = vmul.f32 %v341, %v365
        %v368 = vmul.f32 %v343, %v364
        %v369 = vmul.f32 %v345, %v365
        %v370 = vmul.f32 %v347, %v364
        %v371 = vmul.f32 %v349, %v365
        %v372 = vmul.f32 %v351, %v364
        %v373 = vmul.f32 %v353, %v365
        %vm374 = vcmp.eq.s32.totalorder %v300, 255
        %vm375 = vcmp.eq.s32.totalorder %v301, 255
        %vm376 = vmxor %vm374, 1
        %vm377 = vmxor %vm375, 1
        %v378 = vsel %vm376, 1, 0
        %v379 = vsel %vm377, 1, 0
        %v380 = vcvt.s32.f32 %v378
        %v381 = vcvt.s32.f32 %v379
        %v382 = vsel %vm374, 0, %v300
        %v383 = vsel %vm375, 0, %v301
        %vm384 = vcmp.eq.s32.totalorder %v382, 0
        %vm385 = vcmp.eq.s32.totalorder %v383, 0
        %vm386 = vcmp.eq.s32.totalorder %v382, 1
        %vm387 = vcmp.eq.s32.totalorder %v383, 1
        %vm388 = vcmp.eq.s32.totalorder %v382, 2
        %vm389 = vcmp.eq.s32.totalorder %v383, 2
        %vm390 = vcmp.eq.s32.totalorder %v382, 3
        %vm391 = vcmp.eq.s32.totalorder %v383, 3
        %v392 = vsel %vm384, %v330, 0.0
        %v393 = vsel %vm385, %v331, 0.0
        %v394 = vsel %vm386, %v332, 0.0
        %v395 = vsel %vm387, %v333, 0.0
        %v396 = vsel %vm388, %v334, 0.0
        %v397 = vsel %vm389, %v335, 0.0
        %v398 = vsel %vm390, %v336, 0.0
        %v399 = vsel %vm391, %v337, 0.0
        %v400 = vadd.f32 %v392, %v394
        %v401 = vadd.f32 %v400, %v396
        %v402 = vadd.f32 %v401, %v398
        %v403 = vadd.f32 %v393, %v395
        %v404 = vadd.f32 %v403, %v397
        %v405 = vadd.f32 %v404, %v399
        %v406 = vsub.f32 %v361, %v402
        %v407 = vsub.f32 %v363, %v405
        %v408 = vmul.f32 %v361, 4.0
        %v409 = vmul.f32 %v363, 4.0
        %v410 = vadd.f32 %v330, %v332
        %v411 = vadd.f32 %v410, %v334
        %v412 = vadd.f32 %v411, %v336
        %v413 = vadd.f32 %v331, %v333
        %v414 = vadd.f32 %v413, %v335
        %v415 = vadd.f32 %v414, %v337
        %v416 = vsub.f32 %v408, %v412
        %v417 = vsub.f32 %v409, %v415
        %v418 = vmul.f32 %v406, %v380
        %v419 = vmul.f32 %v407, %v381
        %v420 = vadd.f32 %v418, %v419
        %421 = vadd.xlane.f32.xlu0 %v420
        %v422 = vpop.xlane.xlu0 %421
        %v423 = vrot.slane %v422, 4
        %v424 = vadd.f32 %v422, %v423
        %v425 = vrot.slane %v424, 2
        %v426 = vadd.f32 %v424, %v425
        %v427 = vrot.slane %v426, 1
        %v428 = vadd.f32 %v426, %v427
        %s429 = vtos %v428
        %v430 = vmul.f32 %v416, %v380
        %v431 = vmul.f32 %v417, %v381
        %v432 = vadd.f32 %v430, %v431
        %433 = vadd.xlane.f32.xlu0 %v432
        %v434 = vpop.xlane.xlu0 %433
        %v435 = vrot.slane %v434, 4
        %v436 = vadd.f32 %v434, %v435
        %v437 = vrot.slane %v436, 2
        %v438 = vadd.f32 %v436, %v437
        %v439 = vrot.slane %v438, 1
        %v440 = vadd.f32 %v438, %v439
        %s441 = vtos %v440
        %v442 = vmul.f32 %v366, %v380
        %v443 = vmul.f32 %v367, %v381
        %v444 = vmul.f32 %v368, %v380
        %v445 = vmul.f32 %v369, %v381
        %v446 = vmul.f32 %v370, %v380
        %v447 = vmul.f32 %v371, %v381
        %v448 = vmul.f32 %v372, %v380
        %v449 = vmul.f32 %v373, %v381
        %v450 = vsel %vm384, %v442, 0.0
        %v451 = vsel %vm385, %v443, 0.0
        %v452 = vsel %vm386, %v444, 0.0
        %v453 = vsel %vm387, %v445, 0.0
        %v454 = vsel %vm388, %v446, 0.0
        %v455 = vsel %vm389, %v447, 0.0
        %v456 = vsel %vm390, %v448, 0.0
        %v457 = vsel %vm391, %v449, 0.0
        %458 = vadd.xlane.f32.xlu0 %v450
        %v459 = vpop.xlane.xlu0 %458
        %460 = vadd.xlane.f32.xlu0 %v451
        %v461 = vpop.xlane.xlu0 %460
        %462 = vadd.xlane.f32.xlu0 %v452
        %v463 = vpop.xlane.xlu0 %462
        %464 = vadd.xlane.f32.xlu0 %v453
        %v465 = vpop.xlane.xlu0 %464
        %466 = vadd.xlane.f32.xlu0 %v454
        %v467 = vpop.xlane.xlu0 %466
        %468 = vadd.xlane.f32.xlu0 %v455
        %v469 = vpop.xlane.xlu0 %468
        %470 = vadd.xlane.f32.xlu0 %v456
        %v471 = vpop.xlane.xlu0 %470
        %472 = vadd.xlane.f32.xlu0 %v457
        %v473 = vpop.xlane.xlu0 %472
        %v482 = vlaneseq
        %v483 = vand.u32 %v482, 127
        %v484 = vlaneseq
        %v485 = vshrl.u32 %v484, 7
        %v486 = vsub.s32 %v483, %v485
        %v487 = vrot.slane %v459, %v486
        %v488 = vadd.s32 %v483, 4294967288
        %v489 = vlaneseq
        %v490 = vshrl.u32 %v489, 7
        %v491 = vsub.s32 %v488, %v490
        %v492 = vrot.slane %v461, %v491
        %vm493 = vcmask 130112
        %v494 = vsel %vm493, %v492, %v487
        %v495 = vlaneseq
        %v496 = vshrl.u32 %v495, 7
        %v497 = vsub.s32 %v483, %v496
        %v498 = vrot.slane %v463, %v497
        %v499 = vlaneseq
        %v500 = vshrl.u32 %v499, 7
        %v501 = vsub.s32 %v488, %v500
        %v502 = vrot.slane %v465, %v501
        %v503 = vsel %vm493, %v502, %v498
        %v504 = vlaneseq
        %v505 = vshrl.u32 %v504, 7
        %v506 = vsub.s32 %v483, %v505
        %v507 = vrot.slane %v467, %v506
        %v508 = vlaneseq
        %v509 = vshrl.u32 %v508, 7
        %v510 = vsub.s32 %v488, %v509
        %v511 = vrot.slane %v469, %v510
        %v512 = vsel %vm493, %v511, %v507
        %v513 = vlaneseq
        %v514 = vshrl.u32 %v513, 7
        %v515 = vsub.s32 %v483, %v514
        %v516 = vrot.slane %v471, %v515
        %v517 = vlaneseq
        %v518 = vshrl.u32 %v517, 7
        %v519 = vsub.s32 %v488, %v518
        %v520 = vrot.slane %v473, %v519
        %v521 = vsel %vm493, %v520, %v516
        %vm522 = vcmask 1041409
        %v523 = vsel %vm522, %v503, %v494
        %vm524 = vcmask 1042434
        %v525 = vsel %vm524, %v512, %v523
        %vm526 = vcmask 1043459
        %v527 = vsel %vm526, %v521, %v525
        %vm529 = vcmask 125952
        %v530 = vsel %vm529, %v527, 0.0
        %531 = vadd.xlane.f32.xlu0 %v530
        %v532 = vpop.xlane.xlu0 %531
        %533 = vadd.xlane.f32.xlu0 %v442
        %v534 = vpop.xlane.xlu0 %533
        %535 = vadd.xlane.f32.xlu0 %v443
        %v536 = vpop.xlane.xlu0 %535
        %537 = vadd.xlane.f32.xlu0 %v444
        %v538 = vpop.xlane.xlu0 %537
        %539 = vadd.xlane.f32.xlu0 %v445
        %v540 = vpop.xlane.xlu0 %539
        %541 = vadd.xlane.f32.xlu0 %v446
        %v542 = vpop.xlane.xlu0 %541
        %543 = vadd.xlane.f32.xlu0 %v447
        %v544 = vpop.xlane.xlu0 %543
        %545 = vadd.xlane.f32.xlu0 %v448
        %v546 = vpop.xlane.xlu0 %545
        %547 = vadd.xlane.f32.xlu0 %v449
        %v548 = vpop.xlane.xlu0 %547
        %v557 = vlaneseq
        %v558 = vshrl.u32 %v557, 7
        %v559 = vsub.s32 %v483, %v558
        %v560 = vrot.slane %v534, %v559
        %v561 = vlaneseq
        %v562 = vshrl.u32 %v561, 7
        %v563 = vsub.s32 %v488, %v562
        %v564 = vrot.slane %v536, %v563
        %v565 = vsel %vm493, %v564, %v560
        %v566 = vlaneseq
        %v567 = vshrl.u32 %v566, 7
        %v568 = vsub.s32 %v483, %v567
        %v569 = vrot.slane %v538, %v568
        %v570 = vlaneseq
        %v571 = vshrl.u32 %v570, 7
        %v572 = vsub.s32 %v488, %v571
        %v573 = vrot.slane %v540, %v572
        %v574 = vsel %vm493, %v573, %v569
        %v575 = vlaneseq
        %v576 = vshrl.u32 %v575, 7
        %v577 = vsub.s32 %v483, %v576
        %v578 = vrot.slane %v542, %v577
        %v579 = vlaneseq
        %v580 = vshrl.u32 %v579, 7
        %v581 = vsub.s32 %v488, %v580
        %v582 = vrot.slane %v544, %v581
        %v583 = vsel %vm493, %v582, %v578
        %v584 = vlaneseq
        %v585 = vshrl.u32 %v584, 7
        %v586 = vsub.s32 %v483, %v585
        %v587 = vrot.slane %v546, %v586
        %v588 = vlaneseq
        %v589 = vshrl.u32 %v588, 7
        %v590 = vsub.s32 %v488, %v589
        %v591 = vrot.slane %v548, %v590
        %v592 = vsel %vm493, %v591, %v587
        %v593 = vsel %vm522, %v574, %v565
        %v594 = vsel %vm524, %v583, %v593
        %v595 = vsel %vm526, %v592, %v594
        %v597 = vsel %vm529, %v595, 0.0
        %598 = vadd.xlane.f32.xlu0 %v597
        %v599 = vpop.xlane.xlu0 %598
        %v600 = vsel %vm384, %v380, 0.0
        %v601 = vsel %vm385, %v381, 0.0
        %v602 = vsel %vm386, %v380, 0.0
        %v603 = vsel %vm387, %v381, 0.0
        %v604 = vsel %vm388, %v380, 0.0
        %v605 = vsel %vm389, %v381, 0.0
        %v606 = vsel %vm390, %v380, 0.0
        %v607 = vsel %vm391, %v381, 0.0
        %608 = vadd.xlane.f32.xlu0 %v600
        %v609 = vpop.xlane.xlu0 %608
        %610 = vadd.xlane.f32.xlu0 %v601
        %v611 = vpop.xlane.xlu0 %610
        %612 = vadd.xlane.f32.xlu0 %v602
        %v613 = vpop.xlane.xlu0 %612
        %614 = vadd.xlane.f32.xlu0 %v603
        %v615 = vpop.xlane.xlu0 %614
        %616 = vadd.xlane.f32.xlu0 %v604
        %v617 = vpop.xlane.xlu0 %616
        %618 = vadd.xlane.f32.xlu0 %v605
        %v619 = vpop.xlane.xlu0 %618
        %620 = vadd.xlane.f32.xlu0 %v606
        %v621 = vpop.xlane.xlu0 %620
        %622 = vadd.xlane.f32.xlu0 %v607
        %v623 = vpop.xlane.xlu0 %622
        %v632 = vlaneseq
        %v633 = vshrl.u32 %v632, 7
        %v634 = vsub.s32 %v483, %v633
        %v635 = vrot.slane %v609, %v634
        %v636 = vlaneseq
        %v637 = vshrl.u32 %v636, 7
        %v638 = vsub.s32 %v488, %v637
        %v639 = vrot.slane %v611, %v638
        %v640 = vsel %vm493, %v639, %v635
        %v641 = vlaneseq
        %v642 = vshrl.u32 %v641, 7
        %v643 = vsub.s32 %v483, %v642
        %v644 = vrot.slane %v613, %v643
        %v645 = vlaneseq
        %v646 = vshrl.u32 %v645, 7
        %v647 = vsub.s32 %v488, %v646
        %v648 = vrot.slane %v615, %v647
        %v649 = vsel %vm493, %v648, %v644
        %v650 = vlaneseq
        %v651 = vshrl.u32 %v650, 7
        %v652 = vsub.s32 %v483, %v651
        %v653 = vrot.slane %v617, %v652
        %v654 = vlaneseq
        %v655 = vshrl.u32 %v654, 7
        %v656 = vsub.s32 %v488, %v655
        %v657 = vrot.slane %v619, %v656
        %v658 = vsel %vm493, %v657, %v653
        %v659 = vlaneseq
        %v660 = vshrl.u32 %v659, 7
        %v661 = vsub.s32 %v483, %v660
        %v662 = vrot.slane %v621, %v661
        %v663 = vlaneseq
        %v664 = vshrl.u32 %v663, 7
        %v665 = vsub.s32 %v488, %v664
        %v666 = vrot.slane %v623, %v665
        %v667 = vsel %vm493, %v666, %v662
        %v668 = vsel %vm522, %v649, %v640
        %v669 = vsel %vm524, %v658, %v668
        %v670 = vsel %vm526, %v667, %v669
        %v672 = vsel %vm529, %v670, 0.0
        %673 = vadd.xlane.f32.xlu0 %v672
        %v674 = vpop.xlane.xlu0 %673
        %v675 = vadd.f32 %v599, %v674
        %v676 = vlaneseq
        %v677 = vshrl.u32 %v676, 7
        %vm678 = vcmp.eq.s32.totalorder %v483, %v677
        %v679 = vsel %vm678, 1, 0
        %v680 = vcvt.s32.f32 %v679
        %v681 = vmul.f32 %v532, %v680
        %vm682 = vcmask 1043456
        %v683 = vsel %vm682, %v681, 0.0
        %v684 = vrot.slane %v683, 4
        %v685 = vadd.f32 %v683, %v684
        %v686 = vrot.slane %v685, 2
        %v687 = vadd.f32 %v685, %v686
        %v688 = vrot.slane %v687, 1
        %v689 = vadd.f32 %v687, %v688
        %v690 = vmul.f32 %v675, %v680
        %v691 = vsel %vm682, %v690, 0.0
        %v692 = vrot.slane %v691, 4
        %v693 = vadd.f32 %v691, %v692
        %v694 = vrot.slane %v693, 2
        %v695 = vadd.f32 %v693, %v694
        %v696 = vrot.slane %v695, 1
        %v697 = vadd.f32 %v695, %v696
        %v698 = vmul.f32 %v674, %v680
        %v699 = vsel %vm682, %v698, 0.0
        %v700 = vrot.slane %v699, 4
        %v701 = vadd.f32 %v699, %v700
        %v702 = vrot.slane %v701, 2
        %v703 = vadd.f32 %v701, %v702
        %v704 = vrot.slane %v703, 1
        %v705 = vadd.f32 %v703, %v704
        %vm706 = vcmp.eq.s32.totalorder %v677, 0
        %vm707 = vcmp.eq.s32.totalorder %v483, 0
        %vm708 = vmand %vm706, %vm707
        %v709 = vstv %s429
        %v710 = vsel %vm708, %v709, 0.0
        %vm711 = vcmp.eq.s32.totalorder %v483, 1
        %vm712 = vmand %vm706, %vm711
        %v713 = vstv %s441
        %v714 = vsel %vm712, %v713, 0.0
        %v715 = vadd.f32 %v710, %v714
        %vm716 = vcmp.eq.s32.totalorder %v677, 1
        %v717 = vsel %vm716, %v689, 0.0
        %v718 = vadd.f32 %v715, %v717
        %vm719 = vcmp.eq.s32.totalorder %v677, 2
        %v720 = vsel %vm719, %v697, 0.0
        %v721 = vadd.f32 %v718, %v720
        %vm722 = vcmp.eq.s32.totalorder %v677, 3
        %v723 = vsel %vm722, %v705, 0.0
        %v724 = vadd.f32 %v721, %v723
        %725 = vst [vmem:[%s281] sm:$0xff] %v724
        %s726 = sand.u32 %s105, 1
        %s727 = scalar_lea.sflag [#allocation4], %s726
        %s728 = sand.u32 %s105, 1
        %s729 = smul.addr %s728, 8
        %s730 = scalar_lea.vmem [#allocation7], %s729
        %s731 = sand.u32 %s133, 1
        %s732 = scalar_lea.sflag [#allocation9], %s731
        %s733 = sand.u32 %s133, 1
        %s734 = smul.addr %s733, 8
        %s735 = scalar_lea.vmem [#allocation8], %s734
        // Predicated region
        $region37: #{tpu_custom_call.1} parent=27 // pred_check
          %p736 = pneg %p115
        $region38: #{tpu_custom_call.1} parent=27 // pred_check_branch
          %738 = sbr.rel (%p736) target = $region40
        $region39: #{tpu_custom_call.1} parent=27 // pred_region
          %s740 = ssub.s32 128, 128
          %741 = vsyncadd %s727, %s740
          %s742 = smul.addr %s31, 2
          %s743 = sadd.s32 %s32, %s742
          %s744 = smul.addr %s743, 128
          %s745 = scalar_lea.hbm %s2, %s744
          %s747 = sshll.u32 %s730, 4
          %s748 = int_to_ptr.vmem [resolvable:$true] %s747
          %750 = dma.vmem_to_hbm [thread:$0]  %s748, 128, %s745, %s727
        $region40: #{tpu_custom_call.1} parent=27 // pred_fallthru
          _
        // Predicated region
        $region41: #{tpu_custom_call.1} parent=27 // pred_check
          %p751 = pneg %p143
        $region42: #{tpu_custom_call.1} parent=27 // pred_check_branch
          %753 = sbr.rel (%p751) target = $region44
        $region43: #{tpu_custom_call.1} parent=27 // pred_region
          %s754 = smul.u32 2, %s32
          %s756 = ssub.s32 128, 128
          %757 = vsyncadd %s732, %s756
          %s758 = smul.addr %s31, 4
          %s759 = sadd.s32 %s754, %s758
          %s760 = smul.addr %s759, 64
          %s761 = scalar_lea.hbm %s3, %s760
          %s762 = sshll.u32 %s735, 4
          %s763 = int_to_ptr.vmem [resolvable:$true] %s762
          %768 = dma.vmem_to_hbm [thread:$0]  %s763, 128, %s761, %s732, 64, 64, 4
        $region44: #{tpu_custom_call.1} parent=27 // pred_fallthru
          _
      $region28: #{tpu_custom_call.1} parent=5 // pred_fallthru
        _
      %p769 = scmp.le.s32.totalorder 2, %s22
      // Predicated region
      $region45: #{tpu_custom_call.1} parent=5 // pred_check
        %p770 = pneg %p769
      $region46: #{tpu_custom_call.1} parent=5 // pred_check_branch
        %772 = sbr.rel (%p770) target = $region48
      $region47: #{tpu_custom_call.1} parent=5 // pred_region
        %s773 = ssub.s32 %s22, 2
        // Predicated region
        $region49: #{tpu_custom_call.1} parent=47 // pred_check
          %p774 = pneg %p121
        $region50: #{tpu_custom_call.1} parent=47 // pred_check_branch
          %776 = sbr.rel (%p774) target = $region52
        $region51: #{tpu_custom_call.1} parent=47 // pred_region
          %s777 = sand.u32 %s106, 1
          %s778 = scalar_lea.sflag [#allocation4], %s777
          %s779 = sand.u32 %s106, 1
          %s780 = smul.addr %s779, 8
          %s781 = scalar_lea.vmem [#allocation7], %s780
          %782 = dma.done %s778, 128
        $region52: #{tpu_custom_call.1} parent=47 // pred_fallthru
          _
        // Predicated region
        $region53: #{tpu_custom_call.1} parent=47 // pred_check
          %p783 = pneg %p149
        $region54: #{tpu_custom_call.1} parent=47 // pred_check_branch
          %785 = sbr.rel (%p783) target = $region56
        $region55: #{tpu_custom_call.1} parent=47 // pred_region
          %s786 = sand.u32 %s134, 1
          %s787 = scalar_lea.sflag [#allocation9], %s786
          %s788 = sand.u32 %s134, 1
          %s789 = smul.addr %s788, 8
          %s790 = scalar_lea.vmem [#allocation8], %s789
          %791 = dma.done %s787, 128
        $region56: #{tpu_custom_call.1} parent=47 // pred_fallthru
          _
      $region48: #{tpu_custom_call.1} parent=5 // pred_fallthru
        _
    $region6: #{tpu_custom_call.1} parent=1 // loop_footer
      %s26 = sadd.s32 1, %s22
    $region7: #{tpu_custom_call.1} parent=1 // loop_footer_branch
      %21 = sbr.rel target = $region3
    $region8: #{tpu_custom_call.1} parent=1 // loop_exit
      _
    %792 = vsyncpa [#allocation3], 1
    %s793 = scalar_lea.sflag [#allocation3], 1
    %794 = vsyncpa %s793, 1
    %795 = vsyncpa [#allocation6], 1
    %s796 = scalar_lea.sflag [#allocation6], 1
    %797 = vsyncpa %s796, 1
    %798 = vsyncpa [#allocation4], 1
    %s799 = scalar_lea.sflag [#allocation4], 1
    %800 = vsyncpa %s799, 1
    %801 = vsyncpa [#allocation9], 1
    %s802 = scalar_lea.sflag [#allocation9], 1
    %803 = vsyncpa %s802, 1

</llo_original>
